<compile_context>
chip_gen: v7x
topology: tpu7x:2x2x1
jax: 0.10.0
libtpu: 0.0.40
codegen_flags: <defaults>
</compile_context>

<pallas_src>
import functools

import jax
import jax.numpy as jnp
from jax import lax
from jax.experimental import pallas as pl
from jax.experimental.pallas import tpu as pltpu

LANE = 128


def _round_up(x: int, m: int) -> int:
    return (x + m - 1) // m * m


def _cdiv(a: int, b: int) -> int:
    return -(-a // b)


def _device_kind() -> str:
    try:
        return jax.devices()[0].device_kind.lower()
    except Exception:
        return ""


def _loss_elems_f32(p, t, loss_type: str, target_pad: float):
    """Elementwise masked loss in f32 (shared by the kernel and the JAX tail)."""
    pf = p.astype(jnp.float32)
    tf = t.astype(jnp.float32)
    # loss_mask = targets != target_pad; (p - t) * mask keeps the same NaN/Inf
    # propagation semantics as the PyTorch p*mask - t*mask at masked positions.
    m = (tf != jnp.float32(target_pad)).astype(jnp.float32)
    d = (pf - tf) * m
    if loss_type == "mse":
        return d * d
    if loss_type == "smooth_l1":
        ad = jnp.abs(d)
        return jnp.where(ad < 1.0, 0.5 * d * d, ad - 0.5)  # beta = 1.0
    return jnp.abs(d)  # 'l1' and fallback


def _make_reg_loss_kernel(loss_type: str, target_pad: float, tile_rows: int,
                          n_valid_rows: int, total_tiles: int,
                          tiles_per_core: int, nsplit: int,
                          needs_row_mask: bool):
    """Kernel: accumulate tile-folded masked loss into an (8,128) block per core."""
    last_tile = total_tiles - 1

    def kernel(p_ref, t_ref, out_ref):
        if nsplit == 2:
            c = pl.program_id(0)   # core-split axis (CORE_PARALLEL on v7x)
            i = pl.program_id(1)   # reduction axis ("arbitrary")
            tile_idx = c * tiles_per_core + i
        else:
            i = pl.program_id(0)   # single reduction axis
            tile_idx = i

        @pl.when(i == 0)
        def _():
            out_ref[...] = jnp.zeros_like(out_ref)

        # Native-dtype loads; cast to f32 on the VPU inside the kernel.
        e = _loss_elems_f32(p_ref[...], t_ref[...], loss_type, target_pad)

        def fold_add(x):
            # (tile_rows,128) -> (tile_rows//8, 8, 128) is layout-preserving
            # (exact (8,128) vreg tiles); the axis-0 sum is pure vreg adds.
            # The cross-lane reduction is deferred to the wrapper.
            out_ref[...] += x.reshape(tile_rows // 8, 8, LANE).sum(axis=0)

        if needs_row_mask:
            # Only the single partial last tile pays for the iota/compare/
            # select; full tiles take the cheap branch.
            @pl.when(tile_idx != last_tile)
            def _():
                fold_add(e)

            @pl.when(tile_idx == last_tile)
            def _():
                row_ids = tile_idx * tile_rows + lax.broadcasted_iota(
                    jnp.int32, (tile_rows, LANE), 0)
                fold_add(jnp.where(row_ids < n_valid_rows, e, 0.0))
        else:
            fold_add(e)

    return kernel


class RegLossPallas:
    """JAX/Pallas port of the PyTorch RegLoss module (forward pass)."""

    def __init__(self, cfg, target_pad: float = 0.0, reduction: str = "mean"):
        self.loss_type = cfg["training"]["loss"].lower()
        if self.loss_type not in ("l1", "mse", "smooth_l1"):
            print(f"Loss type '{self.loss_type}' not supported. Defaulting to L1 loss.")
            self.loss_type = "l1"
        self.target_pad = float(target_pad)
        # NB: original module reads the 'loss scale' key (with a space).
        self.loss_scale = float(cfg["model"].get("loss scale", 1.0))
        self.reduction = reduction
        # TODO(synk): reduction='none' (elementwise output tensor) not
        # implemented; only 'mean' / 'sum' are supported by this reduction kernel.
        if self.reduction not in ("mean", "sum"):
            raise NotImplementedError("only 'mean'/'sum' reductions supported")

        kind = _device_kind()
        self._two_cores = "v7" in kind                      # v7x: 2 TCs/chip
        self._block_bytes = (4 << 20) if self._two_cores else (2 << 20)

    @functools.partial(jax.jit, static_argnums=0)
    def __call__(self, preds, targets):
        assert preds.shape == targets.shape
        n = preds.size

        # Sublane-pack alignment for the second-minor dim: 8 (4B), 16 (2B), 32 (1B).
        itemsize = max(jnp.dtype(preds.dtype).itemsize,
                       jnp.dtype(targets.dtype).itemsize)
        row_align = max(8, 32 // itemsize)
        chunk = row_align * LANE

        flat_p = preds.reshape(-1)
        flat_t = targets.reshape(-1)
        n_main = (n // chunk) * chunk

        loss_sum = jnp.float32(0.0)

        if n_main:
            rows = n_main // LANE
            if n_main == n:
                # Pure bitcast view of the original buffers -- no copy, no pad.
                p2 = flat_p.reshape(rows, LANE)
                t2 = flat_t.reshape(rows, LANE)
            else:
                p2 = lax.slice(flat_p, (0,), (n_main,)).reshape(rows, LANE)
                t2 = lax.slice(flat_t, (0,), (n_main,)).reshape(rows, LANE)

            # ~2 MiB (4 MiB on v7x) native-dtype block per input per grid step.
            tr_cand = max(row_align, self._block_bytes // (LANE * itemsize))
            tile_rows = min(tr_cand, rows)
            total_tiles = _cdiv(rows, tile_rows)

            nsplit = 1
            if self._two_cores and total_tiles >= 2:
                nsplit = 2
                if total_tiles % 2:
                    # Shrink tile_rows so the tile count is even (kills the
                    # redundant clamped overflow step); fall back otherwise.
                    tr = min(rows, _round_up(_cdiv(rows, total_tiles + 1), row_align))
                    if _cdiv(rows, tr) % 2 == 0:
                        tile_rows = tr
                        total_tiles = _cdiv(rows, tile_rows)
                    else:
                        nsplit = 1
            tiles_per_core = total_tiles // nsplit
            needs_row_mask = (rows % tile_rows) != 0

            kernel = _make_reg_loss_kernel(
                self.loss_type, self.target_pad, tile_rows, rows,
                total_tiles, tiles_per_core, nsplit, needs_row_mask)

            if nsplit == 2:
                grid = (2, tiles_per_core)
                in_map = lambda c, i: (c * tiles_per_core + i, 0)
                out_map = lambda c, i: (c, 0)
                dim_sem = (getattr(pltpu, "CORE_PARALLEL", "parallel"), "arbitrary")
            else:
                grid = (total_tiles,)
                in_map = lambda i: (i, 0)
                out_map = lambda i: (0, 0)
                dim_sem = ("arbitrary",)

            cost = pl.CostEstimate(
                flops=6 * rows * LANE,
                transcendentals=0,
                bytes_accessed=(rows * LANE
                                * (jnp.dtype(preds.dtype).itemsize
                                   + jnp.dtype(targets.dtype).itemsize)
                                + nsplit * 8 * LANE * 4))

            partials = pl.pallas_call(
                kernel,
                out_shape=jax.ShapeDtypeStruct((nsplit * 8, LANE), jnp.float32),
                grid_spec=pltpu.PrefetchScalarGridSpec(
                    num_scalar_prefetch=0,
                    grid=grid,
                    in_specs=[pl.BlockSpec((tile_rows, LANE), in_map),
                              pl.BlockSpec((tile_rows, LANE), in_map)],
                    out_specs=pl.BlockSpec((8, LANE), out_map)),
                compiler_params=pltpu.CompilerParams(
                    dimension_semantics=dim_sem,
                    vmem_limit_bytes=48 << 20),
                cost_estimate=cost,
            )(p2, t2)
            loss_sum = loss_sum + jnp.sum(partials)

        if n_main != n:
            # < chunk (<= 4095) trailing elements: tiny plain-JAX path.
            tail_p = lax.slice(flat_p, (n_main,), (n,))
            tail_t = lax.slice(flat_t, (n_main,), (n,))
            loss_sum = loss_sum + jnp.sum(
                _loss_elems_f32(tail_p, tail_t, self.loss_type, self.target_pad))

        if self.reduction == "mean":
            loss = loss_sum / jnp.float32(n)
        else:  # 'sum'
            loss = loss_sum

        if self.loss_scale != 1.0:
            loss = loss * jnp.float32(self.loss_scale)
        return loss


def _reference_loss(preds, targets, loss_type, target_pad, reduction, loss_scale):
    e = _loss_elems_f32(preds, targets, loss_type, target_pad)
    loss = jnp.mean(e) if reduction == "mean" else jnp.sum(e)
    return loss * loss_scale


if __name__ == "__main__":
    key = jax.random.PRNGKey(0)
    k1, k2, k3 = jax.random.split(key, 3)

    ok = True

    # Case 1: small NCHW f32 input, all three loss types, mean + loss scale.
    B, C, H, W = 2, 4, 16, 16
    preds = jax.random.normal(k1, (B, C, H, W), dtype=jnp.float32)
    targets = jax.random.normal(k2, (B, C, H, W), dtype=jnp.float32)
    keep = jax.random.bernoulli(k3, p=0.7, shape=(B, C, H, W))
    targets = targets * keep.astype(jnp.float32)

    for loss_name in ("l1", "mse", "smooth_l1"):
        cfg = {"training": {"loss": loss_name}, "model": {"loss scale": 2.0}}
        mod = RegLossPallas(cfg, target_pad=0.0, reduction="mean")
        out = mod(preds, targets)
        jax.block_until_ready(out)
        ref = _reference_loss(preds, targets, loss_name, 0.0, "mean", 2.0)
        if not jnp.allclose(out, ref, rtol=1e-5, atol=1e-6):
            ok = False

    # Case 2: multi-tile with ragged last tile (row mask under pl.when), sum.
    k4, k5, k6 = jax.random.split(jax.random.PRNGKey(1), 3)
    shape2 = (4, 10, 130, 128)   # 665600 elems -> 5200 rows -> 2 tiles of 4096
    pB = jax.random.normal(k4, shape2, dtype=jnp.float32)
    tB = jax.random.normal(k5, shape2, dtype=jnp.float32)
    tB = tB * jax.random.bernoulli(k6, p=0.8, shape=shape2).astype(jnp.float32)
    cfg = {"training": {"loss": "l1"}, "model": {}}
    mod = RegLossPallas(cfg, target_pad=0.0, reduction="sum")
    out = mod(pB, tB)
    jax.block_until_ready(out)
    ref = _reference_loss(pB, tB, "l1", 0.0, "sum", 1.0)
    if not jnp.allclose(out, ref, rtol=5e-4, atol=1e-1):
        ok = False

    # Case 3: native bf16 inputs (cast happens inside the kernel).
    pb = preds.astype(jnp.bfloat16)
    tb = targets.astype(jnp.bfloat16)
    cfg = {"training": {"loss": "smooth_l1"}, "model": {}}
    mod = RegLossPallas(cfg, target_pad=0.0, reduction="mean")
    out = mod(pb, tb)
    jax.block_until_ready(out)
    ref = _reference_loss(pb, tb, "smooth_l1", 0.0, "mean", 1.0)
    if not jnp.allclose(out, ref, rtol=1e-5, atol=1e-6):
        ok = False

    # Case 4: non-chunk-aligned size (kernel on aligned prefix + JAX tail).
    k7, k8, k9 = jax.random.split(jax.random.PRNGKey(2), 3)
    shape4 = (2, 3, 700)   # 4200 elems -> 4096 kernel + 104-elem JAX tail
    pC = jax.random.normal(k7, shape4, dtype=jnp.float32)
    tC = jax.random.normal(k8, shape4, dtype=jnp.float32)
    tC = tC * jax.random.bernoulli(k9, p=0.6, shape=shape4).astype(jnp.float32)
    cfg = {"training": {"loss": "mse"}, "model": {"loss scale": 0.5}}
    mod = RegLossPallas(cfg, target_pad=0.0, reduction="mean")
    out = mod(pC, tC)
    jax.block_until_ready(out)
    ref = _reference_loss(pC, tC, "mse", 0.0, "mean", 0.5)
    if not jnp.allclose(out, ref, rtol=1e-5, atol=1e-6):
        ok = False

    if ok:
        print("KERNEL_OK")
    else:
        print("MISMATCH")
</pallas_src>

<mosaic_0001>
module attributes {stable_mosaic.version = 11 : i64} {
  func.func @kernel(%arg0: i32, %arg1: memref<16x128xf32, #tpu.memory_space<vmem>>, %arg2: memref<16x128xf32, #tpu.memory_space<vmem>>, %arg3: memref<8x128xf32, #tpu.memory_space<vmem>>) attributes {dimension_semantics = [#tpu.dimension_semantics<arbitrary>], iteration_bounds = array<i64: 1>, scalar_prefetch = 0 : i64, scratch_operands = 0 : i64, tpu.core_type = #tpu.core_type<tc>, window_params = [{transform_indices = @transform_0, window_bounds = array<i64: 16, 128>}, {transform_indices = @transform_1, window_bounds = array<i64: 16, 128>}, {pipeline_mode = #tpu.pipeline_mode<synchronous>, transform_indices = @transform_2, window_bounds = array<i64: 8, 128>}]} {
    %c0_i32 = arith.constant 0 : i32
    %0 = arith.cmpi eq, %arg0, %c0_i32 : i32
    %1 = arith.extui %0 : i1 to i32
    %c0_i32_0 = arith.constant 0 : i32
    %2 = arith.cmpi ne, %1, %c0_i32_0 : i32
    scf.if %2 {
      %cst_9 = arith.constant 0.000000e+00 : f32
      %17 = vector.broadcast %cst_9 : f32 to vector<8x128xf32>
      %c0_10 = arith.constant 0 : index
      %c0_11 = arith.constant 0 : index
      %18 = vector.load %arg3[%c0_10, %c0_11] : memref<8x128xf32, #tpu.memory_space<vmem>>, vector<8x128xf32>
      tpu.vector_store %arg3[%c0_10, %c0_11], %17 {strides = array<i32>} : memref<8x128xf32, #tpu.memory_space<vmem>>, vector<8x128xf32>,
    } else {
    }
    %c0 = arith.constant 0 : index
    %c0_1 = arith.constant 0 : index
    %3 = vector.load %arg1[%c0, %c0_1] : memref<16x128xf32, #tpu.memory_space<vmem>>, vector<16x128xf32>
    %c0_2 = arith.constant 0 : index
    %c0_3 = arith.constant 0 : index
    %4 = vector.load %arg2[%c0_2, %c0_3] : memref<16x128xf32, #tpu.memory_space<vmem>>, vector<16x128xf32>
    %cst = arith.constant 0.000000e+00 : f32
    %5 = vector.broadcast %cst : f32 to vector<16x128xf32>
    %6 = arith.cmpf one, %4, %5 : vector<16x128xf32>
    %7 = arith.extui %6 : vector<16x128xi1> to vector<16x128xi32>
    %8 = arith.sitofp %7 : vector<16x128xi32> to vector<16x128xf32>
    %9 = arith.subf %3, %4 : vector<16x128xf32>
    %10 = arith.mulf %9, %8 : vector<16x128xf32>
    %11 = math.absf %10 : vector<16x128xf32>
    %c0_4 = arith.constant 0 : index
    %c0_5 = arith.constant 0 : index
    %12 = vector.load %arg3[%c0_4, %c0_5] : memref<8x128xf32, #tpu.memory_space<vmem>>, vector<8x128xf32>
    %13 = vector.shape_cast %11 : vector<16x128xf32> to vector<2x8x128xf32>
    %cst_6 = arith.constant dense<0.000000e+00> : vector<8x128xf32>
    %14 = vector.multi_reduction <add>, %13, %cst_6 [0] : vector<2x8x128xf32> to vector<8x128xf32>
    %15 = arith.addf %12, %14 : vector<8x128xf32>
    %c0_7 = arith.constant 0 : index
    %c0_8 = arith.constant 0 : index
    %16 = vector.load %arg3[%c0_7, %c0_8] : memref<8x128xf32, #tpu.memory_space<vmem>>, vector<8x128xf32>
    tpu.vector_store %arg3[%c0_7, %c0_8], %15 {strides = array<i32>} : memref<8x128xf32, #tpu.memory_space<vmem>>, vector<8x128xf32>,
    return
  }
  func.func @transform_0(%arg0: i32) -> (i32, i32) {
    %c0_i32 = arith.constant 0 : i32
    %c0_i32_0 = arith.constant 0 : i32
    return %arg0, %c0_i32 : i32, i32
  }
  func.func @transform_1(%arg0: i32) -> (i32, i32) {
    %c0_i32 = arith.constant 0 : i32
    %c0_i32_0 = arith.constant 0 : i32
    return %arg0, %c0_i32 : i32, i32
  }
  func.func @transform_2(%arg0: i32) -> (i32, i32) {
    %c0_i32 = arith.constant 0 : i32
    %c0_i32_0 = arith.constant 0 : i32
    %c0_i32_1 = arith.constant 0 : i32
    return %c0_i32, %c0_i32_0 : i32, i32
  }
}

</mosaic_0001>

<llo_original>
// kernel: a_call__.1
$region0: #{a_call__.1}
  #allocation0 [shape = 'u32[]', space=smem, size = 0x4, offset = 0x4, fixed_abs, tag = 'smem constant byte address 0x4 - core index']
  #allocation1 [shape = 'u32[144,128]{1,0:T(1,128)}', space=vmem, size = 0x12000, scoped, tag = 'internal scratch']
  %s0 = inlined_call_operand.vmem [shape: f32[16,128], index: 0, kind: input, shape index: {}]
  %s1 = inlined_call_operand.vmem [shape: f32[16,128], index: 1, kind: input, shape index: {}]
  %s2 = inlined_call_operand.vmem [shape: f32[8,128], index: 2, kind: output, shape index: {}]
  %s3 = sld [smem:[#allocation0]]
  $region22: #{a_call__.1} parent=0
    _
  %s5 = ssub.s32 1, %s3
  %s6 = scalar_select 0, %s5, %s3
  // Predicated region
  $region2: #{a_call__.1} parent=0 // pred_check
    _
  $region3: #{a_call__.1} parent=0 // pred_check_branch
    %8 = sbr.rel (0) target = $region5
  $region4: #{a_call__.1} parent=0 // pred_region
    _
  $region5: #{a_call__.1} parent=0 // pred_fallthru
    _
  // Predicated region
  $region6: #{a_call__.1} parent=0 // pred_check
    _
  $region7: #{a_call__.1} parent=0 // pred_check_branch
    %10 = sbr.rel (0) target = $region9
  $region8: #{a_call__.1} parent=0 // pred_region
    _
  $region9: #{a_call__.1} parent=0 // pred_fallthru
    _
  %p11 = scmp.eq.s32.totalorder 0, 0
  // Predicated region
  $region10: #{a_call__.1} parent=0 // pred_check
    %p12 = pneg %p11
  $region11: #{a_call__.1} parent=0 // pred_check_branch
    %14 = sbr.rel (%p12) target = $region13
  $region12: #{a_call__.1} parent=0 // pred_region
    %15 = vst [vmem:[%s2] sm:$0xff] 0.0
  $region13: #{a_call__.1} parent=0 // pred_fallthru
    _
  %v16 = vld [vmem:[%s0] sm:$0xff]
  %v17 = vld [vmem:[%s0 + $0x8] sm:$0xff]
  %v18 = vld [vmem:[%s1] sm:$0xff]
  %v19 = vld [vmem:[%s1 + $0x8] sm:$0xff]
  %vm20 = vcmp.ne.f32.partialorder %v18, 0.0
  %vm21 = vcmp.ne.f32.partialorder %v19, 0.0
  %v22 = vsel %vm20, 1, 0
  %v23 = vsel %vm21, 1, 0
  %v24 = vcvt.s32.f32 %v22
  %v25 = vcvt.s32.f32 %v23
  %v26 = vsub.f32 %v16, %v18
  %v27 = vsub.f32 %v17, %v19
  %v28 = vmul.f32 %v26, %v24
  %v29 = vmul.f32 %v27, %v25
  %v30 = vand.u32 2147483647, %v28
  %v31 = vand.u32 2147483647, %v29
  %v32 = vld [vmem:[%s2] sm:$0xff]
  %v33 = vadd.f32 %v30, %v31
  %v34 = vadd.f32 %v32, %v33
  %35 = vst [vmem:[%s2] sm:$0xff] %v34
  // Predicated region
  $region14: #{a_call__.1} parent=0 // pred_check
    _
  $region15: #{a_call__.1} parent=0 // pred_check_branch
    %37 = sbr.rel (0) target = $region17
  $region16: #{a_call__.1} parent=0 // pred_region
    _
  $region17: #{a_call__.1} parent=0 // pred_fallthru
    _
  // Predicated region
  $region18: #{a_call__.1} parent=0 // pred_check
    _
  $region19: #{a_call__.1} parent=0 // pred_check_branch
    %39 = sbr.rel (0) target = $region21
  $region20: #{a_call__.1} parent=0 // pred_region
    _
  $region21: #{a_call__.1} parent=0 // pred_fallthru
    _

</llo_original>
